<compile_context>
chip_gen: v7x
topology: tpu7x:2x2x1
jax: 0.10.0
libtpu: 0.0.40
codegen_flags: <defaults>
</compile_context>

<pallas_src>
import functools

import jax
import jax.numpy as jnp
from jax.experimental import pallas as pl
from jax.experimental.pallas import tpu as pltpu

_MiB = 1024 * 1024


def _round_up(x, m):
    return ((x + m - 1) // m) * m


def _apply_activation(y, activation):
    if activation == "tanh":
        return jnp.tanh(y)
    elif activation == "relu":
        return jnp.maximum(y, 0.0)
    elif activation == "sigmoid":
        return jax.nn.sigmoid(y)
    elif activation == "leaky":
        # torch.nn.LeakyReLU default negative_slope = 0.01
        return jnp.where(y >= 0.0, y, 0.01 * y)
    raise ValueError(f"unknown activation {activation!r}")


# ----------------------------- fused Pallas kernel ---------------------------
def _mlp_fused_kernel(x_ref, *refs, num_layers, activation, compute_dtype):
    """y = act(...act(act(x@W0+b0)@W1+b1)...) for one batch tile.

    x_ref         : (TB, Din)        float32                 VMEM
    refs[2l]      : (Din_l, Dout_l)  compute_dtype (bf16)    VMEM-resident weight
    refs[2l+1]    : (1, Dout_l)      float32                 VMEM-resident bias
    refs[-1]      : (TB, Dout_last)  out dtype               output tile
    Intermediate activations live entirely in VMEM/vregs (no HBM round-trips).
    """
    o_ref = refs[-1]
    # In-kernel cast (VPU, hidden under the MXU) instead of a wrapper-side
    # XLA cast that would add a full extra HBM read+write of x.
    h = x_ref[...].astype(compute_dtype)
    for l in range(num_layers):
        w = refs[2 * l][...]
        b = refs[2 * l + 1][...]
        y = jnp.dot(h, w, preferred_element_type=jnp.float32) + b
        y = _apply_activation(y, activation)
        # Cast back to bf16 so the next MXU pass runs at bf16 rate; keep the
        # final layer's result in f32 for the output store / cast.
        h = y.astype(compute_dtype) if l + 1 < num_layers else y
    o_ref[...] = h.astype(o_ref.dtype)


# ----------------------------- sizing heuristics -----------------------------
def _pick_vmem_limit():
    """Generation-aware scoped-VMEM budget (headroom below physical VMEM)."""
    try:
        cap = int(pltpu.get_tpu_info().vmem_capacity_bytes)
    except Exception:
        cap = 64 * _MiB  # conservative: v7x physical VMEM per TensorCore
    # ~100 MiB on 128-MiB chips (v5e/v6e), ~48 MiB on 64-MiB v7x.
    return max(32 * _MiB, min(cap - 16 * _MiB, 100 * _MiB))


def _pick_batch_tile(B, din, out_dim, widest, out_itemsize, weight_bytes,
                     vmem_budget):
    """Largest batch tile that fits VMEM, kept to >= 2 grid tiles when possible."""
    # Per-row VMEM that scales with the tile: double-buffered f32 x block,
    # double-buffered output block, ~2 f32 temporaries of the widest layer.
    per_row = 2 * din * 4 + 2 * out_dim * out_itemsize + 2 * widest * 4
    avail = max(vmem_budget - weight_bytes - 8 * _MiB, per_row * 8)
    tb_cap = max(8, min(2048, (avail // per_row) // 8 * 8))
    if B <= 8:
        return 8
    # >= 2 grid tiles keeps both v7x TensorCores busy ("parallel" batch axis);
    # at these tile sizes the extra grid step is negligible on 1-TC v5e/v6e.
    return max(8, min(tb_cap, _round_up(pl.cdiv(B, 2), 8)))


# --------------------------------- wrapper ------------------------------------
def mlp_forward(x, params, activation, *, out_dtype=jnp.float32, tb=None):
    """Run the whole MLP in one pallas_call, gridded over the batch axis.

    x      : (B, Din) float32
    params : list of (w_t: (Din_l, Dout_l) bf16, b: (1, Dout_l) f32)
    """
    orig_B = x.shape[0]
    if orig_B < 8:
        # Pad tiny batches up to one 8-row sublane tile (negligible cost).
        x = jnp.pad(x, ((0, 8 - orig_B), (0, 0)))
    B, Din = x.shape
    num_layers = len(params)
    compute_dtype = params[0][0].dtype
    out_dim = params[-1][0].shape[1]
    widest = max(w.shape[1] for w, _ in params)
    out_itemsize = jnp.dtype(out_dtype).itemsize

    vmem_limit = _pick_vmem_limit()
    weight_bytes = sum(w.size * w.dtype.itemsize + b.size * b.dtype.itemsize
                       for w, b in params)
    if weight_bytes > vmem_limit - 8 * _MiB:
        # TODO(synk): for very wide hidden dims (>~2048 bf16 on v7x) tile the
        # layer/N dimension (pltpu.emit_pipeline over weight column blocks)
        # instead of keeping every weight VMEM-resident.
        raise ValueError(
            f"MLP weights ({weight_bytes} B) do not fit the VMEM budget "
            f"({vmem_limit} B); layer-tiled fallback not implemented.")

    if tb is None:
        tb = _pick_batch_tile(B, Din, out_dim, widest, out_itemsize,
                              weight_bytes, vmem_limit)
    grid = (pl.cdiv(B, tb),)

    flops = 2 * B * sum(w.shape[0] * w.shape[1] for w, _ in params)
    transcendentals = (B * sum(w.shape[1] for w, _ in params)
                       if activation in ("tanh", "sigmoid") else 0)
    bytes_accessed = (x.size * x.dtype.itemsize + weight_bytes
                      + B * out_dim * out_itemsize)
    cost = pl.CostEstimate(flops=flops, transcendentals=transcendentals,
                           bytes_accessed=bytes_accessed)
    kernel = functools.partial(
        _mlp_fused_kernel, num_layers=num_layers, activation=activation,
        compute_dtype=compute_dtype)

    def build_and_run(single_buffer_consts):
        # Constant-index weight/bias blocks are DMA'd once; requesting a single
        # VMEM buffer for them halves their footprint (biggest win on v7x).
        const_mode = ({"pipeline_mode": pl.Buffered(1)}
                      if single_buffer_consts else {})
        in_specs = [pl.BlockSpec((tb, Din), lambda i: (i, 0))]
        flat_inputs = [x]
        for w_t, b in params:
            din_l, dout_l = w_t.shape
            flat_inputs += [w_t, b]
            in_specs += [
                pl.BlockSpec((din_l, dout_l), lambda i: (0, 0), **const_mode),
                pl.BlockSpec((1, dout_l), lambda i: (0, 0), **const_mode),
            ]
        return pl.pallas_call(
            kernel,
            out_shape=jax.ShapeDtypeStruct((B, out_dim), out_dtype),
            grid=grid,
            in_specs=in_specs,
            out_specs=pl.BlockSpec((tb, out_dim), lambda i: (i, 0)),
            compiler_params=pltpu.CompilerParams(
                dimension_semantics=("parallel",),  # shards tiles across v7x TCs
                vmem_limit_bytes=vmem_limit,
            ),
            cost_estimate=cost,
        )(*flat_inputs)

    try:
        out = build_and_run(single_buffer_consts=True)
    except Exception:
        # pl.Buffered(1) (single-buffered constants) not supported on this jax
        # build — fall back to default double-buffered weight/bias blocks.
        out = build_and_run(single_buffer_consts=False)
    return out if orig_B == B else out[:orig_B]


# --------------------------------- MLP module --------------------------------
class MLP:
    """JAX/Pallas port of the PyTorch MLP (inference path).

    forward: x = act(Linear_n(...act(Linear_0(x))...)), all layers fused into a
    single Pallas kernel with bf16 operands and f32 MXU accumulation.
    (bf16 weights / inter-layer activations are an intentional numerics change
    vs. the fp32 PyTorch module; output is f32.)
    """

    def __init__(self, input_dim, hidden_dims=(128, 128), activation="tanh",
                 is_dropout=False, param_dtype=jnp.bfloat16, key=None):
        if activation not in ("tanh", "relu", "sigmoid", "leaky"):
            raise ValueError(f"unsupported activation {activation!r}")
        self.activation = activation
        self.out_dim = hidden_dims[-1]
        # TODO(synk): training-time Dropout(p=0.5) after the first layer is not
        # implemented; eval-mode dropout is identity so inference semantics match.
        del is_dropout

        if key is None:
            key = jax.random.PRNGKey(0)
        self.params = []
        last_dim = input_dim
        for nh in hidden_dims:
            key, kw, kb = jax.random.split(key, 3)
            # Match torch.nn.Linear default init: U(-1/sqrt(fan_in), 1/sqrt(fan_in))
            bound = 1.0 / (last_dim ** 0.5)
            w = jax.random.uniform(kw, (nh, last_dim), jnp.float32, -bound, bound)
            b = jax.random.uniform(kb, (nh,), jnp.float32, -bound, bound)
            # Weight stored transposed (in, out) and cast to bf16 (MXU-native);
            # bias kept f32, pre-shaped (1, out) so no per-call reshape.
            self.params.append((jnp.transpose(w).astype(param_dtype),
                                b.reshape(1, nh)))
            last_dim = nh

    def __call__(self, x):
        return mlp_forward(x, self.params, self.activation)


# Pure-JAX reference that mimics the kernel numerics (bf16 ops, f32 accumulate).
def _reference_forward(params, x, activation):
    acts = {
        "tanh": jnp.tanh,
        "relu": lambda v: jnp.maximum(v, 0.0),
        "sigmoid": jax.nn.sigmoid,
        "leaky": lambda v: jnp.where(v >= 0.0, v, 0.01 * v),
    }
    f = acts[activation]
    compute_dtype = params[0][0].dtype
    h = x.astype(compute_dtype)
    n = len(params)
    for l, (w_t, b) in enumerate(params):
        y = jnp.dot(h.astype(jnp.float32), w_t.astype(jnp.float32)) + b
        y = f(y)
        h = y.astype(compute_dtype) if l + 1 < n else y
    return h


if __name__ == "__main__":
    key = jax.random.PRNGKey(0)
    k_in, k_model, k_in2 = jax.random.split(key, 3)

    batch, input_dim = 64, 32           # 2 batch tiles -> exercises the grid
    hidden_dims = (128, 128)

    x = jax.random.normal(k_in, (batch, input_dim), jnp.float32)
    mlp = MLP(input_dim, hidden_dims=hidden_dims, activation="tanh", key=k_model)

    out = jax.block_until_ready(mlp(x))
    ref = _reference_forward(mlp.params, x, "tanh")
    assert out.shape == (batch, hidden_dims[-1])
    assert out.dtype == jnp.float32
    assert jnp.allclose(out, ref, atol=1e-2, rtol=1e-2), \
        float(jnp.max(jnp.abs(out - ref)))

    # Ragged batch (exercises the masked partial final block path).
    x2 = jax.random.normal(k_in2, (50, input_dim), jnp.float32)
    out2 = jax.block_until_ready(mlp(x2))
    ref2 = _reference_forward(mlp.params, x2, "tanh")
    assert out2.shape == (50, hidden_dims[-1])
    assert jnp.allclose(out2, ref2, atol=1e-2, rtol=1e-2), \
        float(jnp.max(jnp.abs(out2 - ref2)))

    print("KERNEL_OK")
</pallas_src>

<mosaic_0001>
module attributes {stable_mosaic.version = 11 : i64} {
  func.func @_mlp_fused_kernel(%arg0: i32, %arg1: memref<32x32xf32, #tpu.memory_space<vmem>>, %arg2: memref<32x128xbf16, #tpu.memory_space<vmem>>, %arg3: memref<1x128xf32, #tpu.memory_space<vmem>>, %arg4: memref<128x128xbf16, #tpu.memory_space<vmem>>, %arg5: memref<1x128xf32, #tpu.memory_space<vmem>>, %arg6: memref<32x128xf32, #tpu.memory_space<vmem>>) attributes {dimension_semantics = [#tpu.dimension_semantics<parallel>], iteration_bounds = array<i64: 2>, scalar_prefetch = 0 : i64, scratch_operands = 0 : i64, tpu.core_type = #tpu.core_type<tc>, window_params = [{transform_indices = @transform_0, window_bounds = array<i64: 32, 32>}, {pipeline_mode = #tpu.pipeline_mode<synchronous>, transform_indices = @transform_1, window_bounds = array<i64: 32, 128>}, {pipeline_mode = #tpu.pipeline_mode<synchronous>, transform_indices = @transform_2, window_bounds = array<i64: 1, 128>}, {pipeline_mode = #tpu.pipeline_mode<synchronous>, transform_indices = @transform_3, window_bounds = array<i64: 128, 128>}, {pipeline_mode = #tpu.pipeline_mode<synchronous>, transform_indices = @transform_4, window_bounds = array<i64: 1, 128>}, {transform_indices = @transform_5, window_bounds = array<i64: 32, 128>}]} {
    %c0 = arith.constant 0 : index
    %c0_0 = arith.constant 0 : index
    %0 = vector.load %arg1[%c0, %c0_0] : memref<32x32xf32, #tpu.memory_space<vmem>>, vector<32x32xf32>
    %1 = arith.truncf %0 : vector<32x32xf32> to vector<32x32xbf16>
    %c0_1 = arith.constant 0 : index
    %c0_2 = arith.constant 0 : index
    %2 = vector.load %arg2[%c0_1, %c0_2] : memref<32x128xbf16, #tpu.memory_space<vmem>>, vector<32x128xbf16>
    %c0_3 = arith.constant 0 : index
    %c0_4 = arith.constant 0 : index
    %3 = vector.load %arg3[%c0_3, %c0_4] : memref<1x128xf32, #tpu.memory_space<vmem>>, vector<1x128xf32>
    %cst = arith.constant dense<0.000000e+00> : vector<32x128xf32>
    %4 = tpu.matmul %1, %2, %cst {dimension_numbers = #tpu.dot_dimension_numbers<[1], [0], [0], [1], [0, 0, 1, 1], [], []>} : vector<32x32xbf16>, vector<32x128xbf16>, vector<32x128xf32> -> vector<32x128xf32>
    %5 = vector.broadcast %3 : vector<1x128xf32> to vector<32x128xf32>
    %6 = arith.addf %4, %5 : vector<32x128xf32>
    %7 = math.tanh %6 : vector<32x128xf32>
    %8 = arith.truncf %7 : vector<32x128xf32> to vector<32x128xbf16>
    %c0_5 = arith.constant 0 : index
    %c0_6 = arith.constant 0 : index
    %9 = vector.load %arg4[%c0_5, %c0_6] : memref<128x128xbf16, #tpu.memory_space<vmem>>, vector<128x128xbf16>
    %c0_7 = arith.constant 0 : index
    %c0_8 = arith.constant 0 : index
    %10 = vector.load %arg5[%c0_7, %c0_8] : memref<1x128xf32, #tpu.memory_space<vmem>>, vector<1x128xf32>
    %cst_9 = arith.constant dense<0.000000e+00> : vector<32x128xf32>
    %11 = tpu.matmul %8, %9, %cst_9 {dimension_numbers = #tpu.dot_dimension_numbers<[1], [0], [0], [1], [0, 0, 1, 1], [], []>} : vector<32x128xbf16>, vector<128x128xbf16>, vector<32x128xf32> -> vector<32x128xf32>
    %12 = vector.broadcast %10 : vector<1x128xf32> to vector<32x128xf32>
    %13 = arith.addf %11, %12 : vector<32x128xf32>
    %14 = math.tanh %13 : vector<32x128xf32>
    %c0_10 = arith.constant 0 : index
    %c0_11 = arith.constant 0 : index
    %15 = vector.load %arg6[%c0_10, %c0_11] : memref<32x128xf32, #tpu.memory_space<vmem>>, vector<32x128xf32>
    tpu.vector_store %arg6[%c0_10, %c0_11], %14 {strides = array<i32>} : memref<32x128xf32, #tpu.memory_space<vmem>>, vector<32x128xf32>,
    return
  }
  func.func @transform_0(%arg0: i32) -> (i32, i32) {
    %c0_i32 = arith.constant 0 : i32
    %c0_i32_0 = arith.constant 0 : i32
    return %arg0, %c0_i32 : i32, i32
  }
  func.func @transform_1(%arg0: i32) -> (i32, i32) {
    %c0_i32 = arith.constant 0 : i32
    %c0_i32_0 = arith.constant 0 : i32
    %c0_i32_1 = arith.constant 0 : i32
    return %c0_i32, %c0_i32_0 : i32, i32
  }
  func.func @transform_2(%arg0: i32) -> (i32, i32) {
    %c0_i32 = arith.constant 0 : i32
    %c0_i32_0 = arith.constant 0 : i32
    %c0_i32_1 = arith.constant 0 : i32
    return %c0_i32, %c0_i32_0 : i32, i32
  }
  func.func @transform_3(%arg0: i32) -> (i32, i32) {
    %c0_i32 = arith.constant 0 : i32
    %c0_i32_0 = arith.constant 0 : i32
    %c0_i32_1 = arith.constant 0 : i32
    return %c0_i32, %c0_i32_0 : i32, i32
  }
  func.func @transform_4(%arg0: i32) -> (i32, i32) {
    %c0_i32 = arith.constant 0 : i32
    %c0_i32_0 = arith.constant 0 : i32
    %c0_i32_1 = arith.constant 0 : i32
    return %c0_i32, %c0_i32_0 : i32, i32
  }
  func.func @transform_5(%arg0: i32) -> (i32, i32) {
    %c0_i32 = arith.constant 0 : i32
    %c0_i32_0 = arith.constant 0 : i32
    return %arg0, %c0_i32 : i32, i32
  }
}

module attributes {stable_mosaic.version = 11 : i64} {
  func.func @_mlp_fused_kernel(%arg0: i32, %arg1: memref<32x32xf32, #tpu.memory_space<vmem>>, %arg2: memref<32x128xbf16, #tpu.memory_space<vmem>>, %arg3: memref<1x128xf32, #tpu.memory_space<vmem>>, %arg4: memref<128x128xbf16, #tpu.memory_space<vmem>>, %arg5: memref<1x128xf32, #tpu.memory_space<vmem>>, %arg6: memref<32x128xf32, #tpu.memory_space<vmem>>) attributes {dimension_semantics = [#tpu.dimension_semantics<parallel>], iteration_bounds = array<i64: 2>, scalar_prefetch = 0 : i64, scratch_operands = 0 : i64, tpu.core_type = #tpu.core_type<tc>, window_params = [{transform_indices = @transform_0, window_bounds = array<i64: 32, 32>}, {pipeline_mode = #tpu.pipeline_mode<synchronous>, transform_indices = @transform_1, window_bounds = array<i64: 32, 128>}, {pipeline_mode = #tpu.pipeline_mode<synchronous>, transform_indices = @transform_2, window_bounds = array<i64: 1, 128>}, {pipeline_mode = #tpu.pipeline_mode<synchronous>, transform_indices = @transform_3, window_bounds = array<i64: 128, 128>}, {pipeline_mode = #tpu.pipeline_mode<synchronous>, transform_indices = @transform_4, window_bounds = array<i64: 1, 128>}, {transform_indices = @transform_5, window_bounds = array<i64: 32, 128>}]} {
    %c0 = arith.constant 0 : index
    %c0_0 = arith.constant 0 : index
    %0 = vector.load %arg1[%c0, %c0_0] : memref<32x32xf32, #tpu.memory_space<vmem>>, vector<32x32xf32>
    %1 = arith.truncf %0 : vector<32x32xf32> to vector<32x32xbf16>
    %c0_1 = arith.constant 0 : index
    %c0_2 = arith.constant 0 : index
    %2 = vector.load %arg2[%c0_1, %c0_2] : memref<32x128xbf16, #tpu.memory_space<vmem>>, vector<32x128xbf16>
    %c0_3 = arith.constant 0 : index
    %c0_4 = arith.constant 0 : index
    %3 = vector.load %arg3[%c0_3, %c0_4] : memref<1x128xf32, #tpu.memory_space<vmem>>, vector<1x128xf32>
    %cst = arith.constant dense<0.000000e+00> : vector<32x128xf32>
    %4 = tpu.matmul %1, %2, %cst {dimension_numbers = #tpu.dot_dimension_numbers<[1], [0], [0], [1], [0, 0, 1, 1], [], []>} : vector<32x32xbf16>, vector<32x128xbf16>, vector<32x128xf32> -> vector<32x128xf32>
    %5 = vector.broadcast %3 : vector<1x128xf32> to vector<32x128xf32>
    %6 = arith.addf %4, %5 : vector<32x128xf32>
    %7 = math.tanh %6 : vector<32x128xf32>
    %8 = arith.truncf %7 : vector<32x128xf32> to vector<32x128xbf16>
    %c0_5 = arith.constant 0 : index
    %c0_6 = arith.constant 0 : index
    %9 = vector.load %arg4[%c0_5, %c0_6] : memref<128x128xbf16, #tpu.memory_space<vmem>>, vector<128x128xbf16>
    %c0_7 = arith.constant 0 : index
    %c0_8 = arith.constant 0 : index
    %10 = vector.load %arg5[%c0_7, %c0_8] : memref<1x128xf32, #tpu.memory_space<vmem>>, vector<1x128xf32>
    %cst_9 = arith.constant dense<0.000000e+00> : vector<32x128xf32>
    %11 = tpu.matmul %8, %9, %cst_9 {dimension_numbers = #tpu.dot_dimension_numbers<[1], [0], [0], [1], [0, 0, 1, 1], [], []>} : vector<32x128xbf16>, vector<128x128xbf16>, vector<32x128xf32> -> vector<32x128xf32>
    %12 = vector.broadcast %10 : vector<1x128xf32> to vector<32x128xf32>
    %13 = arith.addf %11, %12 : vector<32x128xf32>
    %14 = math.tanh %13 : vector<32x128xf32>
    %c0_10 = arith.constant 0 : index
    %c0_11 = arith.constant 0 : index
    %15 = vector.load %arg6[%c0_10, %c0_11] : memref<32x128xf32, #tpu.memory_space<vmem>>, vector<32x128xf32>
    tpu.vector_store %arg6[%c0_10, %c0_11], %14 {strides = array<i32>} : memref<32x128xf32, #tpu.memory_space<vmem>>, vector<32x128xf32>,
    return
  }
  func.func @transform_0(%arg0: i32) -> (i32, i32) {
    %c0_i32 = arith.constant 0 : i32
    %c0_i32_0 = arith.constant 0 : i32
    return %arg0, %c0_i32 : i32, i32
  }
  func.func @transform_1(%arg0: i32) -> (i32, i32) {
    %c0_i32 = arith.constant 0 : i32
    %c0_i32_0 = arith.constant 0 : i32
    %c0_i32_1 = arith.constant 0 : i32
    return %c0_i32, %c0_i32_0 : i32, i32
  }
  func.func @transform_2(%arg0: i32) -> (i32, i32) {
    %c0_i32 = arith.constant 0 : i32
    %c0_i32_0 = arith.constant 0 : i32
    %c0_i32_1 = arith.constant 0 : i32
    return %c0_i32, %c0_i32_0 : i32, i32
  }
  func.func @transform_3(%arg0: i32) -> (i32, i32) {
    %c0_i32 = arith.constant 0 : i32
    %c0_i32_0 = arith.constant 0 : i32
    %c0_i32_1 = arith.constant 0 : i32
    return %c0_i32, %c0_i32_0 : i32, i32
  }
  func.func @transform_4(%arg0: i32) -> (i32, i32) {
    %c0_i32 = arith.constant 0 : i32
    %c0_i32_0 = arith.constant 0 : i32
    %c0_i32_1 = arith.constant 0 : i32
    return %c0_i32, %c0_i32_0 : i32, i32
  }
  func.func @transform_5(%arg0: i32) -> (i32, i32) {
    %c0_i32 = arith.constant 0 : i32
    %c0_i32_0 = arith.constant 0 : i32
    return %arg0, %c0_i32 : i32, i32
  }
}

</mosaic_0001>

<llo_original>
// kernel: tpu_custom_call.1
$region0: #{tpu_custom_call.1}
  #allocation0 [shape = 'u32[]', space=smem, size = 0x4, offset = 0x4, fixed_abs, tag = 'smem constant byte address 0x4 - core index']
  #allocation1 [shape = 'u32[144,128]{1,0:T(1,128)}', space=vmem, size = 0x12000, scoped, tag = 'internal scratch']
  %s0 = inlined_call_operand.vmem [shape: f32[64,32], index: 0, kind: input, shape index: {}]
  %s1 = inlined_call_operand.vmem [shape: bf16[32,128], index: 1, kind: input, shape index: {}]
  %s2 = inlined_call_operand.vmem [shape: f32[1,128], index: 2, kind: input, shape index: {}]
  %s3 = inlined_call_operand.vmem [shape: bf16[128,128], index: 3, kind: input, shape index: {}]
  %s4 = inlined_call_operand.vmem [shape: f32[1,128], index: 4, kind: input, shape index: {}]
  %s5 = inlined_call_operand.hbm [shape: f32[64,128], index: 5, kind: output, shape index: {}]
  %s6 = sld [smem:[#allocation0]]
  $region53: #{tpu_custom_call.1} parent=0
    _
  %s8 = ssub.s32 1, %s6
  %s9 = scalar_select 0, %s8, %s6
  $region1: #{tpu_custom_call.1} parent=0
    #allocation2 [shape = 'u8[32768]{0}', space=vmem, size = 0x8000, scoped, tag = 'output window, operand 0']
    #allocation3 [shape = 's32[2]{0}', space=sflag, size = 0x8, scoped, tag = 'scoped memory for tpu_custom_call.1']
    %10 = vsyncpa [#allocation3], 0
    %s11 = scalar_lea.sflag [#allocation3], 1
    %12 = vsyncpa %s11, 0
    loop: start=0, step=1, limit=4
    $region2: #{tpu_custom_call.1} parent=1 // loop_pre_header
      _
    $region3: #{tpu_custom_call.1} parent=1 // loop_header
      %s14 = sphi 0, %s18
      %p15 = scmp.ge.s32.totalorder %s14, 4
      %s24 = sphi 0, %s26
      %s27 = sphi 0, %s24
      %s28 = sphi 0, %s27
      %s44 = sphi 0, %s28
      %s48 = sphi 0, %s48
      %s50 = sphi 0, %s48
      %s51 = sphi 0, %s50
      %s65 = sphi 0, %s51
      %s69 = sphi 0, %s69
      %s71 = sphi 0, %s69
      %s72 = sphi 0, %s71
      %s86 = sphi 0, %s72
      %s90 = sphi 0, %s90
      %s92 = sphi 0, %s90
      %s93 = sphi 0, %s92
      %s107 = sphi 0, %s93
      %s111 = sphi 0, %s111
      %s113 = sphi 0, %s111
      %s114 = sphi 0, %s113
      %s128 = sphi 0, %s114
      %s134 = sphi 0, %s136
      %s137 = sphi 0, %s134
      %s138 = sphi 0, %s137
      %s154 = sphi 0, %s138
    $region4: #{tpu_custom_call.1} parent=1 // loop_header_branch
      %17 = sbr.rel (%p15) target = $region8
    $region5: #{tpu_custom_call.1} parent=1 // loop_body
      %s19 = ssub.s32 %s14, 1
      %s20 = ssub.s32 %s14, 2
      %s21 = sadd.s32 %s14, 1
      %s22 = ssub.s32 %s14, %s21
      %p23 = scmp.eq.s32.totalorder %s22, 0
      %s25 = sadd.s32 %s24, 1
      %s26 = scalar_select %p23, %s24, %s25
      %p29 = pneg %p23
      %p30 = scmp.eq.s32.totalorder %s14, 1
      %p31 = por %p29, %p30
      %p32 = scmp.ne.s32.totalorder %s24, %s27
      %p33 = scmp.eq.s32.totalorder %s14, 0
      %p34 = por %p32, %p33
      %p35 = scmp.ne.s32.totalorder %s24, %s27
      %p36 = scmp.eq.s32.totalorder %s19, 1
      %p37 = por %p35, %p36
      %p38 = scmp.ne.s32.totalorder %s27, %s28
      %p39 = scmp.eq.s32.totalorder %s19, 0
      %p40 = por %p38, %p39
      %p41 = scmp.ne.s32.totalorder %s27, %s28
      %p42 = scmp.eq.s32.totalorder %s20, 1
      %p43 = por %p41, %p42
      %p45 = scmp.ne.s32.totalorder %s28, %s44
      %p46 = scmp.eq.s32.totalorder %s20, 0
      %p47 = por %p45, %p46
      %s49 = sadd.s32 %s48, 1
      %p52 = scmp.eq.s32.totalorder %s14, 1
      %p53 = scmp.ne.s32.totalorder %s48, %s50
      %p54 = scmp.eq.s32.totalorder %s14, 0
      %p55 = por %p53, %p54
      %p56 = scmp.ne.s32.totalorder %s48, %s50
      %p57 = scmp.eq.s32.totalorder %s19, 1
      %p58 = por %p56, %p57
      %p59 = scmp.ne.s32.totalorder %s50, %s51
      %p60 = scmp.eq.s32.totalorder %s19, 0
      %p61 = por %p59, %p60
      %p62 = scmp.ne.s32.totalorder %s50, %s51
      %p63 = scmp.eq.s32.totalorder %s20, 1
      %p64 = por %p62, %p63
      %p66 = scmp.ne.s32.totalorder %s51, %s65
      %p67 = scmp.eq.s32.totalorder %s20, 0
      %p68 = por %p66, %p67
      %s70 = sadd.s32 %s69, 1
      %p73 = scmp.eq.s32.totalorder %s14, 1
      %p74 = scmp.ne.s32.totalorder %s69, %s71
      %p75 = scmp.eq.s32.totalorder %s14, 0
      %p76 = por %p74, %p75
      %p77 = scmp.ne.s32.totalorder %s69, %s71
      %p78 = scmp.eq.s32.totalorder %s19, 1
      %p79 = por %p77, %p78
      %p80 = scmp.ne.s32.totalorder %s71, %s72
      %p81 = scmp.eq.s32.totalorder %s19, 0
      %p82 = por %p80, %p81
      %p83 = scmp.ne.s32.totalorder %s71, %s72
      %p84 = scmp.eq.s32.totalorder %s20, 1
      %p85 = por %p83, %p84
      %p87 = scmp.ne.s32.totalorder %s72, %s86
      %p88 = scmp.eq.s32.totalorder %s20, 0
      %p89 = por %p87, %p88
      %s91 = sadd.s32 %s90, 1
      %p94 = scmp.eq.s32.totalorder %s14, 1
      %p95 = scmp.ne.s32.totalorder %s90, %s92
      %p96 = scmp.eq.s32.totalorder %s14, 0
      %p97 = por %p95, %p96
      %p98 = scmp.ne.s32.totalorder %s90, %s92
      %p99 = scmp.eq.s32.totalorder %s19, 1
      %p100 = por %p98, %p99
      %p101 = scmp.ne.s32.totalorder %s92, %s93
      %p102 = scmp.eq.s32.totalorder %s19, 0
      %p103 = por %p101, %p102
      %p104 = scmp.ne.s32.totalorder %s92, %s93
      %p105 = scmp.eq.s32.totalorder %s20, 1
      %p106 = por %p104, %p105
      %p108 = scmp.ne.s32.totalorder %s93, %s107
      %p109 = scmp.eq.s32.totalorder %s20, 0
      %p110 = por %p108, %p109
      %s112 = sadd.s32 %s111, 1
      %p115 = scmp.eq.s32.totalorder %s14, 1
      %p116 = scmp.ne.s32.totalorder %s111, %s113
      %p117 = scmp.eq.s32.totalorder %s14, 0
      %p118 = por %p116, %p117
      %p119 = scmp.ne.s32.totalorder %s111, %s113
      %p120 = scmp.eq.s32.totalorder %s19, 1
      %p121 = por %p119, %p120
      %p122 = scmp.ne.s32.totalorder %s113, %s114
      %p123 = scmp.eq.s32.totalorder %s19, 0
      %p124 = por %p122, %p123
      %p125 = scmp.ne.s32.totalorder %s113, %s114
      %p126 = scmp.eq.s32.totalorder %s20, 1
      %p127 = por %p125, %p126
      %p129 = scmp.ne.s32.totalorder %s114, %s128
      %p130 = scmp.eq.s32.totalorder %s20, 0
      %p131 = por %p129, %p130
      %s132 = ssub.s32 %s14, %s21
      %p133 = scmp.eq.s32.totalorder %s132, 0
      %s135 = sadd.s32 %s134, 1
      %s136 = scalar_select %p133, %s134, %s135
      %p139 = pneg %p133
      %p140 = scmp.eq.s32.totalorder %s14, 1
      %p141 = por %p139, %p140
      %p142 = scmp.ne.s32.totalorder %s134, %s137
      %p143 = scmp.eq.s32.totalorder %s14, 0
      %p144 = por %p142, %p143
      %p145 = scmp.ne.s32.totalorder %s134, %s137
      %p146 = scmp.eq.s32.totalorder %s19, 1
      %p147 = por %p145, %p146
      %p148 = scmp.ne.s32.totalorder %s137, %s138
      %p149 = scmp.eq.s32.totalorder %s19, 0
      %p150 = por %p148, %p149
      %p151 = scmp.ne.s32.totalorder %s137, %s138
      %p152 = scmp.eq.s32.totalorder %s20, 1
      %p153 = por %p151, %p152
      %p155 = scmp.ne.s32.totalorder %s138, %s154
      %p156 = scmp.eq.s32.totalorder %s20, 0
      %p157 = por %p155, %p156
      %p158 = scmp.le.s32.totalorder 1, %s14
      %p159 = scmp.lt.s32.totalorder %s14, 3
      %p160 = pnand %p158, %p159
      %p161 = pneg %p160
      // Predicated region
      $region9: #{tpu_custom_call.1} parent=5 // pred_check
        _
      $region10: #{tpu_custom_call.1} parent=5 // pred_check_branch
        %163 = sbr.rel (%p160) target = $region12
      $region11: #{tpu_custom_call.1} parent=5 // pred_region
        %s164 = ssub.s32 %s14, 1
        // Predicated region
        $region13: #{tpu_custom_call.1} parent=11 // pred_check
          %p165 = pneg %p61
        $region14: #{tpu_custom_call.1} parent=11 // pred_check_branch
          %167 = sbr.rel (%p165) target = $region16
        $region15: #{tpu_custom_call.1} parent=11 // pred_region
          _
        $region16: #{tpu_custom_call.1} parent=11 // pred_fallthru
          _
        // Predicated region
        $region17: #{tpu_custom_call.1} parent=11 // pred_check
          %p168 = pneg %p82
        $region18: #{tpu_custom_call.1} parent=11 // pred_check_branch
          %170 = sbr.rel (%p168) target = $region20
        $region19: #{tpu_custom_call.1} parent=11 // pred_region
          _
        $region20: #{tpu_custom_call.1} parent=11 // pred_fallthru
          _
        // Predicated region
        $region21: #{tpu_custom_call.1} parent=11 // pred_check
          %p171 = pneg %p103
        $region22: #{tpu_custom_call.1} parent=11 // pred_check_branch
          %173 = sbr.rel (%p171) target = $region24
        $region23: #{tpu_custom_call.1} parent=11 // pred_region
          _
        $region24: #{tpu_custom_call.1} parent=11 // pred_fallthru
          _
        // Predicated region
        $region25: #{tpu_custom_call.1} parent=11 // pred_check
          %p174 = pneg %p124
        $region26: #{tpu_custom_call.1} parent=11 // pred_check_branch
          %176 = sbr.rel (%p174) target = $region28
        $region27: #{tpu_custom_call.1} parent=11 // pred_region
          _
        $region28: #{tpu_custom_call.1} parent=11 // pred_fallthru
          _
      $region12: #{tpu_custom_call.1} parent=5 // pred_fallthru
        _
      %p177 = scmp.lt.s32.totalorder %s14, 2
      // Predicated region
      $region29: #{tpu_custom_call.1} parent=5 // pred_check
        %p178 = pneg %p177
      $region30: #{tpu_custom_call.1} parent=5 // pred_check_branch
        %180 = sbr.rel (%p178) target = $region32
      $region31: #{tpu_custom_call.1} parent=5 // pred_region
        // Predicated region
        $region33: #{tpu_custom_call.1} parent=31 // pred_check
          %p181 = pneg %p34
        $region34: #{tpu_custom_call.1} parent=31 // pred_check_branch
          %183 = sbr.rel (%p181) target = $region36
        $region35: #{tpu_custom_call.1} parent=31 // pred_region
          %s184 = smul.u32 4, %s14
          %p185 = scmp.lt.s32.totalorder %s184, 7
          %s186 = scalar_select %p185, %s184, 7
          %s187 = smul.addr %s186, 8
          %s188 = scalar_lea.vmem %s0, %s187
          %s189 = smul.u32 4, %s14
        $region36: #{tpu_custom_call.1} parent=31 // pred_fallthru
          _
      $region32: #{tpu_custom_call.1} parent=5 // pred_fallthru
        _
      %p190 = scmp.le.s32.totalorder 1, %s14
      %p191 = scmp.lt.s32.totalorder %s14, 3
      %p192 = pnand %p190, %p191
      %p193 = pneg %p192
      // Predicated region
      $region37: #{tpu_custom_call.1} parent=5 // pred_check
        _
      $region38: #{tpu_custom_call.1} parent=5 // pred_check_branch
        %195 = sbr.rel (%p192) target = $region40
      $region39: #{tpu_custom_call.1} parent=5 // pred_region
        %s196 = ssub.s32 %s14, 1
        %s197 = smul.u32 4, %s19
        %p198 = scmp.lt.s32.totalorder %s197, 7
        %s199 = scalar_select %p198, %s197, 7
        %s200 = smul.addr %s199, 8
        %s201 = scalar_lea.vmem %s0, %s200
        %p202 = pneg %p40
        %p203 = pneg %p37
        %p204 = pneg %p61
        %p205 = pneg %p58
        %p206 = pneg %p82
        %p207 = pneg %p79
        %p208 = pneg %p103
        %p209 = pneg %p100
        %p210 = pneg %p124
        %p211 = pneg %p121
        %p212 = pneg %p150
        %p213 = pneg %p147
        %s214 = sand.u32 %s137, 1
        %s215 = scalar_lea.sflag [#allocation3], %s214
        %s216 = sand.u32 %s137, 1
        %s217 = smul.addr %s216, 32
        %s218 = scalar_lea.vmem [#allocation2], %s217
        %s219 = smul.u32 4, %s19
        %p220 = scmp.lt.s32.totalorder %s219, 7
        %s221 = scalar_select %p220, %s219, 7
        %s222 = smul.addr %s221, 8
        %s223 = scalar_lea.vmem %s0, %s222
        %s224 = smul.u32 4, %s19
        %s225 = smul.u32 4, %s19
        %v227 = vld [vmem:[%s223] sm:$0xff]
        %v228 = vld [vmem:[%s223 + $0x8] sm:$0xff]
        %v229 = vld [vmem:[%s223 + $0x10] sm:$0xff]
        %v230 = vld [vmem:[%s223 + $0x18] sm:$0xff]
        %v231 = vpack.c.bf16 %v228, %v227
        %v232 = vpack.c.bf16 %v230, %v229
        %v233 = vld [vmem:[%s1] sm:$0xf]
        %v234 = vld [vmem:[%s1 + $0x4] sm:$0xf]
        %v235 = vld [vmem:[%s1 + $0x8] sm:$0xf]
        %v236 = vld [vmem:[%s1 + $0xc] sm:$0xf]
        %v237 = vld [vmem:[%s2] sm:$0x1]
        %v239 = vlaneseq
        %v240 = vshrl.u32 %v239, 7
        %v241 = vsub.s32 0, %v240
        %v242 = vrot.slane %v237, %v241
        %v248 = vunpack.c.l.b16 %v233
        %v249 = vunpack.c.l.b16 %v234
        %v250 = vunpack.c.l.b16 %v235
        %v251 = vunpack.c.l.b16 %v236
        %v252 = vpack.c.b16 %v249, %v248
        %v253 = vpack.c.b16 %v251, %v250
        %vm256 = vcmask 261120
        %v258 = vsel %vm256, %v231, 0
        %v261 = vsel %vm256, %v232, 0
        %263 = vmatprep.subr.bf16.mxu0 0
        %264 = vmatpush1.bf16.msra.mxu0 %v252
        %265 = vmatprep.subr.bf16.mxu0 0
        %266 = vmatpush1.bf16.msra.mxu0 %v253
        %267 = vmatprep.subr.bf16.mxu0 0
        %268 = vmatpush1.bf16.msra.mxu0 0
        %269 = vmatprep.subr.bf16.mxu0 0
        %270 = vmatpush1.bf16.msra.mxu0 0
        %271 = vmatprep.subr.bf16.mxu0 0
        %272 = vmatpush1.bf16.msra.mxu0 0
        %273 = vmatprep.subr.bf16.mxu0 0
        %274 = vmatpush1.bf16.msra.mxu0 0
        %275 = vmatprep.subr.bf16.mxu0 0
        %276 = vmatpush1.bf16.msra.mxu0 0
        %277 = vmatprep.subr.bf16.mxu0 0
        %278 = vmatpush1.bf16.msra.mxu0 0
        %279 = vmatprep.subr.bf16.mxu0 0
        %280 = vmatpush1.bf16.msra.mxu0 0
        %281 = vmatprep.subr.bf16.mxu0 0
        %282 = vmatpush1.bf16.msra.mxu0 0
        %283 = vmatprep.subr.bf16.mxu0 0
        %284 = vmatpush1.bf16.msra.mxu0 0
        %285 = vmatprep.subr.bf16.mxu0 0
        %286 = vmatpush1.bf16.msra.mxu0 0
        %287 = vmatprep.subr.bf16.mxu0 0
        %288 = vmatpush1.bf16.msra.mxu0 0
        %289 = vmatprep.subr.bf16.mxu0 0
        %290 = vmatpush1.bf16.msra.mxu0 0
        %291 = vmatprep.subr.bf16.mxu0 0
        %292 = vmatpush1.bf16.msra.mxu0 0
        %293 = vmatprep.subr.bf16.mxu0 0
        %294 = vmatpush1.bf16.msra.mxu0 0
        %295 = vmatprep.mubr.bf16.mxu0 0
        %296 = vmatmul.mubr.bf16.gmra.mrb[0].mxu0 %v258
        %v297 = vpop.f32.mrb[0].mxu0
        %v298 = vadd.f32 %v242, %v297
        %v299 = vpop.f32.mrb[0].mxu0
        %v300 = vpop.f32.mrb[0].mxu0
        %v301 = vadd.f32 %v242, %v300
        %v302 = vpop.f32.mrb[0].mxu0
        %303 = vmatprep.mubr.bf16.mxu0 0
        %304 = vmatmul.mubr.bf16.gmra.mrb[0].mxu0 %v261
        %v305 = vpop.f32.mrb[0].mxu0
        %v306 = vadd.f32 %v242, %v305
        %v307 = vpop.f32.mrb[0].mxu0
        %v308 = vpop.f32.mrb[0].mxu0
        %v309 = vadd.f32 %v242, %v308
        %v310 = vpop.f32.mrb[0].mxu0
        %311 = vdwg.mxu0
        %v312 = vtanh.pop %v298
        %v313 = vtanh.pop %v301
        %v314 = vtanh.pop %v306
        %v315 = vtanh.pop %v309
        %v316 = vpack.c.bf16 %v313, %v312
        %v317 = vpack.c.bf16 %v315, %v314
        %v318 = vld [vmem:[%s3] sm:$0xf]
        %v319 = vld [vmem:[%s3 + $0x4] sm:$0xf]
        %v320 = vld [vmem:[%s3 + $0x8] sm:$0xf]
        %v321 = vld [vmem:[%s3 + $0xc] sm:$0xf]
        %v322 = vld [vmem:[%s3 + $0x10] sm:$0xf]
        %v323 = vld [vmem:[%s3 + $0x14] sm:$0xf]
        %v324 = vld [vmem:[%s3 + $0x18] sm:$0xf]
        %v325 = vld [vmem:[%s3 + $0x1c] sm:$0xf]
        %v326 = vld [vmem:[%s3 + $0x20] sm:$0xf]
        %v327 = vld [vmem:[%s3 + $0x24] sm:$0xf]
        %v328 = vld [vmem:[%s3 + $0x28] sm:$0xf]
        %v329 = vld [vmem:[%s3 + $0x2c] sm:$0xf]
        %v330 = vld [vmem:[%s3 + $0x30] sm:$0xf]
        %v331 = vld [vmem:[%s3 + $0x34] sm:$0xf]
        %v332 = vld [vmem:[%s3 + $0x38] sm:$0xf]
        %v333 = vld [vmem:[%s3 + $0x3c] sm:$0xf]
        %v334 = vld [vmem:[%s4] sm:$0x1]
        %v336 = vlaneseq
        %v337 = vshrl.u32 %v336, 7
        %v338 = vsub.s32 0, %v337
        %v339 = vrot.slane %v334, %v338
        %v357 = vunpack.c.l.b16 %v318
        %v358 = vunpack.c.l.b16 %v319
        %v359 = vunpack.c.l.b16 %v320
        %v360 = vunpack.c.l.b16 %v321
        %v361 = vunpack.c.l.b16 %v322
        %v362 = vunpack.c.l.b16 %v323
        %v363 = vunpack.c.l.b16 %v324
        %v364 = vunpack.c.l.b16 %v325
        %v365 = vunpack.c.l.b16 %v326
        %v366 = vunpack.c.l.b16 %v327
        %v367 = vunpack.c.l.b16 %v328
        %v368 = vunpack.c.l.b16 %v329
        %v369 = vunpack.c.l.b16 %v330
        %v370 = vunpack.c.l.b16 %v331
        %v371 = vunpack.c.l.b16 %v332
        %v372 = vunpack.c.l.b16 %v333
        %v373 = vpack.c.b16 %v358, %v357
        %v374 = vpack.c.b16 %v360, %v359
        %v375 = vpack.c.b16 %v362, %v361
        %v376 = vpack.c.b16 %v364, %v363
        %v377 = vpack.c.b16 %v366, %v365
        %v378 = vpack.c.b16 %v368, %v367
        %v379 = vpack.c.b16 %v370, %v369
        %v380 = vpack.c.b16 %v372, %v371
        %389 = vmatprep.subr.bf16.mxu0 0
        %390 = vmatpush1.bf16.msra.mxu0 %v373
        %391 = vmatprep.subr.bf16.mxu0 0
        %392 = vmatpush1.bf16.msra.mxu0 %v374
        %393 = vmatprep.subr.bf16.mxu0 0
        %394 = vmatpush1.bf16.msra.mxu0 %v375
        %395 = vmatprep.subr.bf16.mxu0 0
        %396 = vmatpush1.bf16.msra.mxu0 %v376
        %397 = vmatprep.subr.bf16.mxu0 0
        %398 = vmatpush1.bf16.msra.mxu0 %v377
        %399 = vmatprep.subr.bf16.mxu0 0
        %400 = vmatpush1.bf16.msra.mxu0 %v378
        %401 = vmatprep.subr.bf16.mxu0 0
        %402 = vmatpush1.bf16.msra.mxu0 %v379
        %403 = vmatprep.subr.bf16.mxu0 0
        %404 = vmatpush1.bf16.msra.mxu0 %v380
        %405 = vmatprep.subr.bf16.mxu0 0
        %406 = vmatpush1.bf16.msra.mxu0 0
        %407 = vmatprep.subr.bf16.mxu0 0
        %408 = vmatpush1.bf16.msra.mxu0 0
        %409 = vmatprep.subr.bf16.mxu0 0
        %410 = vmatpush1.bf16.msra.mxu0 0
        %411 = vmatprep.subr.bf16.mxu0 0
        %412 = vmatpush1.bf16.msra.mxu0 0
        %413 = vmatprep.subr.bf16.mxu0 0
        %414 = vmatpush1.bf16.msra.mxu0 0
        %415 = vmatprep.subr.bf16.mxu0 0
        %416 = vmatpush1.bf16.msra.mxu0 0
        %417 = vmatprep.subr.bf16.mxu0 0
        %418 = vmatpush1.bf16.msra.mxu0 0
        %419 = vmatprep.subr.bf16.mxu0 0
        %420 = vmatpush1.bf16.msra.mxu0 0
        %421 = vmatprep.mubr.bf16.mxu0 0
        %422 = vmatmul.mubr.bf16.gmra.mrb[0].mxu0 %v316
        %v423 = vpop.f32.mrb[0].mxu0
        %v424 = vadd.f32 %v339, %v423
        %v425 = vpop.f32.mrb[0].mxu0
        %v426 = vpop.f32.mrb[0].mxu0
        %v427 = vadd.f32 %v339, %v426
        %v428 = vpop.f32.mrb[0].mxu0
        %429 = vmatprep.mubr.bf16.mxu0 0
        %430 = vmatmul.mubr.bf16.gmra.mrb[0].mxu0 %v317
        %v431 = vpop.f32.mrb[0].mxu0
        %v432 = vadd.f32 %v339, %v431
        %v433 = vpop.f32.mrb[0].mxu0
        %v434 = vpop.f32.mrb[0].mxu0
        %v435 = vadd.f32 %v339, %v434
        %v436 = vpop.f32.mrb[0].mxu0
        %437 = vdwg.mxu0
        %v438 = vtanh.pop %v424
        %v439 = vtanh.pop %v427
        %v440 = vtanh.pop %v432
        %v441 = vtanh.pop %v435
        %442 = vst [vmem:[%s218] sm:$0xff] %v438
        %443 = vst [vmem:[%s218 + $0x8] sm:$0xff] %v439
        %444 = vst [vmem:[%s218 + $0x10] sm:$0xff] %v440
        %445 = vst [vmem:[%s218 + $0x18] sm:$0xff] %v441
        %s446 = sand.u32 %s137, 1
        %s447 = scalar_lea.sflag [#allocation3], %s446
        %s448 = sand.u32 %s137, 1
        %s449 = smul.addr %s448, 32
        %s450 = scalar_lea.vmem [#allocation2], %s449
        // Predicated region
        $region41: #{tpu_custom_call.1} parent=39 // pred_check
          %p451 = pneg %p147
        $region42: #{tpu_custom_call.1} parent=39 // pred_check_branch
          %453 = sbr.rel (%p451) target = $region44
        $region43: #{tpu_custom_call.1} parent=39 // pred_region
          %s454 = smul.u32 4, %s19
          %s456 = ssub.s32 512, 512
          %457 = vsyncadd %s447, %s456
          %s458 = smul.addr %s454, 128
          %s459 = scalar_lea.hbm %s5, %s458
          %s460 = sshll.u32 %s450, 4
          %s461 = int_to_ptr.vmem [resolvable:$true] %s460
          %466 = dma.vmem_to_hbm [thread:$0]  %s461, 512, %s459, %s447, 128, 128, 8
        $region44: #{tpu_custom_call.1} parent=39 // pred_fallthru
          _
      $region40: #{tpu_custom_call.1} parent=5 // pred_fallthru
        _
      %p467 = scmp.le.s32.totalorder 2, %s14
      // Predicated region
      $region45: #{tpu_custom_call.1} parent=5 // pred_check
        %p468 = pneg %p467
      $region46: #{tpu_custom_call.1} parent=5 // pred_check_branch
        %470 = sbr.rel (%p468) target = $region48
      $region47: #{tpu_custom_call.1} parent=5 // pred_region
        %s471 = ssub.s32 %s14, 2
        // Predicated region
        $region49: #{tpu_custom_call.1} parent=47 // pred_check
          %p472 = pneg %p153
        $region50: #{tpu_custom_call.1} parent=47 // pred_check_branch
          %474 = sbr.rel (%p472) target = $region52
        $region51: #{tpu_custom_call.1} parent=47 // pred_region
          %s475 = sand.u32 %s138, 1
          %s476 = scalar_lea.sflag [#allocation3], %s475
          %s477 = sand.u32 %s138, 1
          %s478 = smul.addr %s477, 32
          %s479 = scalar_lea.vmem [#allocation2], %s478
          %480 = dma.done %s476, 512
        $region52: #{tpu_custom_call.1} parent=47 // pred_fallthru
          _
      $region48: #{tpu_custom_call.1} parent=5 // pred_fallthru
        _
    $region6: #{tpu_custom_call.1} parent=1 // loop_footer
      %s18 = sadd.s32 1, %s14
    $region7: #{tpu_custom_call.1} parent=1 // loop_footer_branch
      %13 = sbr.rel target = $region3
    $region8: #{tpu_custom_call.1} parent=1 // loop_exit
      _
    %481 = vsyncpa [#allocation3], 1
    %s482 = scalar_lea.sflag [#allocation3], 1
    %483 = vsyncpa %s482, 1

// kernel: tpu_custom_call.1
$region0: #{tpu_custom_call.1}
  #allocation0 [shape = 'u32[]', space=smem, size = 0x4, offset = 0x4, fixed_abs, tag = 'smem constant byte address 0x4 - core index']
  #allocation1 [shape = 'u32[144,128]{1,0:T(1,128)}', space=vmem, size = 0x12000, scoped, tag = 'internal scratch']
  %s0 = inlined_call_operand.vmem [shape: f32[64,32], index: 0, kind: input, shape index: {}]
  %s1 = inlined_call_operand.vmem [shape: bf16[32,128], index: 1, kind: input, shape index: {}]
  %s2 = inlined_call_operand.vmem [shape: f32[1,128], index: 2, kind: input, shape index: {}]
  %s3 = inlined_call_operand.vmem [shape: bf16[128,128], index: 3, kind: input, shape index: {}]
  %s4 = inlined_call_operand.vmem [shape: f32[1,128], index: 4, kind: input, shape index: {}]
  %s5 = inlined_call_operand.hbm [shape: f32[64,128], index: 5, kind: output, shape index: {}]
  %s6 = sld [smem:[#allocation0]]
  $region53: #{tpu_custom_call.1} parent=0
    _
  %s8 = ssub.s32 1, %s6
  %s9 = scalar_select 0, %s8, %s6
  $region1: #{tpu_custom_call.1} parent=0
    #allocation2 [shape = 'u8[32768]{0}', space=vmem, size = 0x8000, scoped, tag = 'output window, operand 0']
    #allocation3 [shape = 's32[2]{0}', space=sflag, size = 0x8, scoped, tag = 'scoped memory for tpu_custom_call.1']
    %10 = vsyncpa [#allocation3], 0
    %s11 = scalar_lea.sflag [#allocation3], 1
    %12 = vsyncpa %s11, 0
    loop: start=0, step=1, limit=4
    $region2: #{tpu_custom_call.1} parent=1 // loop_pre_header
      _
    $region3: #{tpu_custom_call.1} parent=1 // loop_header
      %s14 = sphi 0, %s18
      %p15 = scmp.ge.s32.totalorder %s14, 4
      %s24 = sphi 0, %s26
      %s27 = sphi 0, %s24
      %s28 = sphi 0, %s27
      %s44 = sphi 0, %s28
      %s48 = sphi 0, %s48
      %s50 = sphi 0, %s48
      %s51 = sphi 0, %s50
      %s65 = sphi 0, %s51
      %s69 = sphi 0, %s69
      %s71 = sphi 0, %s69
      %s72 = sphi 0, %s71
      %s86 = sphi 0, %s72
      %s90 = sphi 0, %s90
      %s92 = sphi 0, %s90
      %s93 = sphi 0, %s92
      %s107 = sphi 0, %s93
      %s111 = sphi 0, %s111
      %s113 = sphi 0, %s111
      %s114 = sphi 0, %s113
      %s128 = sphi 0, %s114
      %s134 = sphi 0, %s136
      %s137 = sphi 0, %s134
      %s138 = sphi 0, %s137
      %s154 = sphi 0, %s138
    $region4: #{tpu_custom_call.1} parent=1 // loop_header_branch
      %17 = sbr.rel (%p15) target = $region8
    $region5: #{tpu_custom_call.1} parent=1 // loop_body
      %s19 = ssub.s32 %s14, 1
      %s20 = ssub.s32 %s14, 2
      %s21 = sadd.s32 %s14, 1
      %s22 = ssub.s32 %s14, %s21
      %p23 = scmp.eq.s32.totalorder %s22, 0
      %s25 = sadd.s32 %s24, 1
      %s26 = scalar_select %p23, %s24, %s25
      %p29 = pneg %p23
      %p30 = scmp.eq.s32.totalorder %s14, 1
      %p31 = por %p29, %p30
      %p32 = scmp.ne.s32.totalorder %s24, %s27
      %p33 = scmp.eq.s32.totalorder %s14, 0
      %p34 = por %p32, %p33
      %p35 = scmp.ne.s32.totalorder %s24, %s27
      %p36 = scmp.eq.s32.totalorder %s19, 1
      %p37 = por %p35, %p36
      %p38 = scmp.ne.s32.totalorder %s27, %s28
      %p39 = scmp.eq.s32.totalorder %s19, 0
      %p40 = por %p38, %p39
      %p41 = scmp.ne.s32.totalorder %s27, %s28
      %p42 = scmp.eq.s32.totalorder %s20, 1
      %p43 = por %p41, %p42
      %p45 = scmp.ne.s32.totalorder %s28, %s44
      %p46 = scmp.eq.s32.totalorder %s20, 0
      %p47 = por %p45, %p46
      %s49 = sadd.s32 %s48, 1
      %p52 = scmp.eq.s32.totalorder %s14, 1
      %p53 = scmp.ne.s32.totalorder %s48, %s50
      %p54 = scmp.eq.s32.totalorder %s14, 0
      %p55 = por %p53, %p54
      %p56 = scmp.ne.s32.totalorder %s48, %s50
      %p57 = scmp.eq.s32.totalorder %s19, 1
      %p58 = por %p56, %p57
      %p59 = scmp.ne.s32.totalorder %s50, %s51
      %p60 = scmp.eq.s32.totalorder %s19, 0
      %p61 = por %p59, %p60
      %p62 = scmp.ne.s32.totalorder %s50, %s51
      %p63 = scmp.eq.s32.totalorder %s20, 1
      %p64 = por %p62, %p63
      %p66 = scmp.ne.s32.totalorder %s51, %s65
      %p67 = scmp.eq.s32.totalorder %s20, 0
      %p68 = por %p66, %p67
      %s70 = sadd.s32 %s69, 1
      %p73 = scmp.eq.s32.totalorder %s14, 1
      %p74 = scmp.ne.s32.totalorder %s69, %s71
      %p75 = scmp.eq.s32.totalorder %s14, 0
      %p76 = por %p74, %p75
      %p77 = scmp.ne.s32.totalorder %s69, %s71
      %p78 = scmp.eq.s32.totalorder %s19, 1
      %p79 = por %p77, %p78
      %p80 = scmp.ne.s32.totalorder %s71, %s72
      %p81 = scmp.eq.s32.totalorder %s19, 0
      %p82 = por %p80, %p81
      %p83 = scmp.ne.s32.totalorder %s71, %s72
      %p84 = scmp.eq.s32.totalorder %s20, 1
      %p85 = por %p83, %p84
      %p87 = scmp.ne.s32.totalorder %s72, %s86
      %p88 = scmp.eq.s32.totalorder %s20, 0
      %p89 = por %p87, %p88
      %s91 = sadd.s32 %s90, 1
      %p94 = scmp.eq.s32.totalorder %s14, 1
      %p95 = scmp.ne.s32.totalorder %s90, %s92
      %p96 = scmp.eq.s32.totalorder %s14, 0
      %p97 = por %p95, %p96
      %p98 = scmp.ne.s32.totalorder %s90, %s92
      %p99 = scmp.eq.s32.totalorder %s19, 1
      %p100 = por %p98, %p99
      %p101 = scmp.ne.s32.totalorder %s92, %s93
      %p102 = scmp.eq.s32.totalorder %s19, 0
      %p103 = por %p101, %p102
      %p104 = scmp.ne.s32.totalorder %s92, %s93
      %p105 = scmp.eq.s32.totalorder %s20, 1
      %p106 = por %p104, %p105
      %p108 = scmp.ne.s32.totalorder %s93, %s107
      %p109 = scmp.eq.s32.totalorder %s20, 0
      %p110 = por %p108, %p109
      %s112 = sadd.s32 %s111, 1
      %p115 = scmp.eq.s32.totalorder %s14, 1
      %p116 = scmp.ne.s32.totalorder %s111, %s113
      %p117 = scmp.eq.s32.totalorder %s14, 0
      %p118 = por %p116, %p117
      %p119 = scmp.ne.s32.totalorder %s111, %s113
      %p120 = scmp.eq.s32.totalorder %s19, 1
      %p121 = por %p119, %p120
      %p122 = scmp.ne.s32.totalorder %s113, %s114
      %p123 = scmp.eq.s32.totalorder %s19, 0
      %p124 = por %p122, %p123
      %p125 = scmp.ne.s32.totalorder %s113, %s114
      %p126 = scmp.eq.s32.totalorder %s20, 1
      %p127 = por %p125, %p126
      %p129 = scmp.ne.s32.totalorder %s114, %s128
      %p130 = scmp.eq.s32.totalorder %s20, 0
      %p131 = por %p129, %p130
      %s132 = ssub.s32 %s14, %s21
      %p133 = scmp.eq.s32.totalorder %s132, 0
      %s135 = sadd.s32 %s134, 1
      %s136 = scalar_select %p133, %s134, %s135
      %p139 = pneg %p133
      %p140 = scmp.eq.s32.totalorder %s14, 1
      %p141 = por %p139, %p140
      %p142 = scmp.ne.s32.totalorder %s134, %s137
      %p143 = scmp.eq.s32.totalorder %s14, 0
      %p144 = por %p142, %p143
      %p145 = scmp.ne.s32.totalorder %s134, %s137
      %p146 = scmp.eq.s32.totalorder %s19, 1
      %p147 = por %p145, %p146
      %p148 = scmp.ne.s32.totalorder %s137, %s138
      %p149 = scmp.eq.s32.totalorder %s19, 0
      %p150 = por %p148, %p149
      %p151 = scmp.ne.s32.totalorder %s137, %s138
      %p152 = scmp.eq.s32.totalorder %s20, 1
      %p153 = por %p151, %p152
      %p155 = scmp.ne.s32.totalorder %s138, %s154
      %p156 = scmp.eq.s32.totalorder %s20, 0
      %p157 = por %p155, %p156
      %p158 = scmp.le.s32.totalorder 1, %s14
      %p159 = scmp.lt.s32.totalorder %s14, 3
      %p160 = pnand %p158, %p159
      %p161 = pneg %p160
      // Predicated region
      $region9: #{tpu_custom_call.1} parent=5 // pred_check
        _
      $region10: #{tpu_custom_call.1} parent=5 // pred_check_branch
        %163 = sbr.rel (%p160) target = $region12
      $region11: #{tpu_custom_call.1} parent=5 // pred_region
        %s164 = ssub.s32 %s14, 1
        // Predicated region
        $region13: #{tpu_custom_call.1} parent=11 // pred_check
          %p165 = pneg %p61
        $region14: #{tpu_custom_call.1} parent=11 // pred_check_branch
          %167 = sbr.rel (%p165) target = $region16
        $region15: #{tpu_custom_call.1} parent=11 // pred_region
          _
        $region16: #{tpu_custom_call.1} parent=11 // pred_fallthru
          _
        // Predicated region
        $region17: #{tpu_custom_call.1} parent=11 // pred_check
          %p168 = pneg %p82
        $region18: #{tpu_custom_call.1} parent=11 // pred_check_branch
          %170 = sbr.rel (%p168) target = $region20
        $region19: #{tpu_custom_call.1} parent=11 // pred_region
          _
        $region20: #{tpu_custom_call.1} parent=11 // pred_fallthru
          _
        // Predicated region
        $region21: #{tpu_custom_call.1} parent=11 // pred_check
          %p171 = pneg %p103
        $region22: #{tpu_custom_call.1} parent=11 // pred_check_branch
          %173 = sbr.rel (%p171) target = $region24
        $region23: #{tpu_custom_call.1} parent=11 // pred_region
          _
        $region24: #{tpu_custom_call.1} parent=11 // pred_fallthru
          _
        // Predicated region
        $region25: #{tpu_custom_call.1} parent=11 // pred_check
          %p174 = pneg %p124
        $region26: #{tpu_custom_call.1} parent=11 // pred_check_branch
          %176 = sbr.rel (%p174) target = $region28
        $region27: #{tpu_custom_call.1} parent=11 // pred_region
          _
        $region28: #{tpu_custom_call.1} parent=11 // pred_fallthru
          _
      $region12: #{tpu_custom_call.1} parent=5 // pred_fallthru
        _
      %p177 = scmp.lt.s32.totalorder %s14, 2
      // Predicated region
      $region29: #{tpu_custom_call.1} parent=5 // pred_check
        %p178 = pneg %p177
      $region30: #{tpu_custom_call.1} parent=5 // pred_check_branch
        %180 = sbr.rel (%p178) target = $region32
      $region31: #{tpu_custom_call.1} parent=5 // pred_region
        // Predicated region
        $region33: #{tpu_custom_call.1} parent=31 // pred_check
          %p181 = pneg %p34
        $region34: #{tpu_custom_call.1} parent=31 // pred_check_branch
          %183 = sbr.rel (%p181) target = $region36
        $region35: #{tpu_custom_call.1} parent=31 // pred_region
          %s184 = smul.u32 4, %s14
          %p185 = scmp.lt.s32.totalorder %s184, 7
          %s186 = scalar_select %p185, %s184, 7
          %s187 = smul.addr %s186, 8
          %s188 = scalar_lea.vmem %s0, %s187
          %s189 = smul.u32 4, %s14
        $region36: #{tpu_custom_call.1} parent=31 // pred_fallthru
          _
      $region32: #{tpu_custom_call.1} parent=5 // pred_fallthru
        _
      %p190 = scmp.le.s32.totalorder 1, %s14
      %p191 = scmp.lt.s32.totalorder %s14, 3
      %p192 = pnand %p190, %p191
      %p193 = pneg %p192
      // Predicated region
      $region37: #{tpu_custom_call.1} parent=5 // pred_check
        _
      $region38: #{tpu_custom_call.1} parent=5 // pred_check_branch
        %195 = sbr.rel (%p192) target = $region40
      $region39: #{tpu_custom_call.1} parent=5 // pred_region
        %s196 = ssub.s32 %s14, 1
        %s197 = smul.u32 4, %s19
        %p198 = scmp.lt.s32.totalorder %s197, 7
        %s199 = scalar_select %p198, %s197, 7
        %s200 = smul.addr %s199, 8
        %s201 = scalar_lea.vmem %s0, %s200
        %p202 = pneg %p40
        %p203 = pneg %p37
        %p204 = pneg %p61
        %p205 = pneg %p58
        %p206 = pneg %p82
        %p207 = pneg %p79
        %p208 = pneg %p103
        %p209 = pneg %p100
        %p210 = pneg %p124
        %p211 = pneg %p121
        %p212 = pneg %p150
        %p213 = pneg %p147
        %s214 = sand.u32 %s137, 1
        %s215 = scalar_lea.sflag [#allocation3], %s214
        %s216 = sand.u32 %s137, 1
        %s217 = smul.addr %s216, 32
        %s218 = scalar_lea.vmem [#allocation2], %s217
        %s219 = smul.u32 4, %s19
        %p220 = scmp.lt.s32.totalorder %s219, 7
        %s221 = scalar_select %p220, %s219, 7
        %s222 = smul.addr %s221, 8
        %s223 = scalar_lea.vmem %s0, %s222
        %s224 = smul.u32 4, %s19
        %s225 = smul.u32 4, %s19
        %v227 = vld [vmem:[%s223] sm:$0xff]
        %v228 = vld [vmem:[%s223 + $0x8] sm:$0xff]
        %v229 = vld [vmem:[%s223 + $0x10] sm:$0xff]
        %v230 = vld [vmem:[%s223 + $0x18] sm:$0xff]
        %v231 = vpack.c.bf16 %v228, %v227
        %v232 = vpack.c.bf16 %v230, %v229
        %v233 = vld [vmem:[%s1] sm:$0xf]
        %v234 = vld [vmem:[%s1 + $0x4] sm:$0xf]
        %v235 = vld [vmem:[%s1 + $0x8] sm:$0xf]
        %v236 = vld [vmem:[%s1 + $0xc] sm:$0xf]
        %v237 = vld [vmem:[%s2] sm:$0x1]
        %v239 = vlaneseq
        %v240 = vshrl.u32 %v239, 7
        %v241 = vsub.s32 0, %v240
        %v242 = vrot.slane %v237, %v241
        %v248 = vunpack.c.l.b16 %v233
        %v249 = vunpack.c.l.b16 %v234
        %v250 = vunpack.c.l.b16 %v235
        %v251 = vunpack.c.l.b16 %v236
        %v252 = vpack.c.b16 %v249, %v248
        %v253 = vpack.c.b16 %v251, %v250
        %vm256 = vcmask 261120
        %v258 = vsel %vm256, %v231, 0
        %v261 = vsel %vm256, %v232, 0
        %263 = vmatprep.subr.bf16.mxu0 0
        %264 = vmatpush1.bf16.msra.mxu0 %v252
        %265 = vmatprep.subr.bf16.mxu0 0
        %266 = vmatpush1.bf16.msra.mxu0 %v253
        %267 = vmatprep.subr.bf16.mxu0 0
        %268 = vmatpush1.bf16.msra.mxu0 0
        %269 = vmatprep.subr.bf16.mxu0 0
        %270 = vmatpush1.bf16.msra.mxu0 0
        %271 = vmatprep.subr.bf16.mxu0 0
        %272 = vmatpush1.bf16.msra.mxu0 0
        %273 = vmatprep.subr.bf16.mxu0 0
        %274 = vmatpush1.bf16.msra.mxu0 0
        %275 = vmatprep.subr.bf16.mxu0 0
        %276 = vmatpush1.bf16.msra.mxu0 0
        %277 = vmatprep.subr.bf16.mxu0 0
        %278 = vmatpush1.bf16.msra.mxu0 0
        %279 = vmatprep.subr.bf16.mxu0 0
        %280 = vmatpush1.bf16.msra.mxu0 0
        %281 = vmatprep.subr.bf16.mxu0 0
        %282 = vmatpush1.bf16.msra.mxu0 0
        %283 = vmatprep.subr.bf16.mxu0 0
        %284 = vmatpush1.bf16.msra.mxu0 0
        %285 = vmatprep.subr.bf16.mxu0 0
        %286 = vmatpush1.bf16.msra.mxu0 0
        %287 = vmatprep.subr.bf16.mxu0 0
        %288 = vmatpush1.bf16.msra.mxu0 0
        %289 = vmatprep.subr.bf16.mxu0 0
        %290 = vmatpush1.bf16.msra.mxu0 0
        %291 = vmatprep.subr.bf16.mxu0 0
        %292 = vmatpush1.bf16.msra.mxu0 0
        %293 = vmatprep.subr.bf16.mxu0 0
        %294 = vmatpush1.bf16.msra.mxu0 0
        %295 = vmatprep.mubr.bf16.mxu0 0
        %296 = vmatmul.mubr.bf16.gmra.mrb[0].mxu0 %v258
        %v297 = vpop.f32.mrb[0].mxu0
        %v298 = vadd.f32 %v242, %v297
        %v299 = vpop.f32.mrb[0].mxu0
        %v300 = vpop.f32.mrb[0].mxu0
        %v301 = vadd.f32 %v242, %v300
        %v302 = vpop.f32.mrb[0].mxu0
        %303 = vmatprep.mubr.bf16.mxu0 0
        %304 = vmatmul.mubr.bf16.gmra.mrb[0].mxu0 %v261
        %v305 = vpop.f32.mrb[0].mxu0
        %v306 = vadd.f32 %v242, %v305
        %v307 = vpop.f32.mrb[0].mxu0
        %v308 = vpop.f32.mrb[0].mxu0
        %v309 = vadd.f32 %v242, %v308
        %v310 = vpop.f32.mrb[0].mxu0
        %311 = vdwg.mxu0
        %v312 = vtanh.pop %v298
        %v313 = vtanh.pop %v301
        %v314 = vtanh.pop %v306
        %v315 = vtanh.pop %v309
        %v316 = vpack.c.bf16 %v313, %v312
        %v317 = vpack.c.bf16 %v315, %v314
        %v318 = vld [vmem:[%s3] sm:$0xf]
        %v319 = vld [vmem:[%s3 + $0x4] sm:$0xf]
        %v320 = vld [vmem:[%s3 + $0x8] sm:$0xf]
        %v321 = vld [vmem:[%s3 + $0xc] sm:$0xf]
        %v322 = vld [vmem:[%s3 + $0x10] sm:$0xf]
        %v323 = vld [vmem:[%s3 + $0x14] sm:$0xf]
        %v324 = vld [vmem:[%s3 + $0x18] sm:$0xf]
        %v325 = vld [vmem:[%s3 + $0x1c] sm:$0xf]
        %v326 = vld [vmem:[%s3 + $0x20] sm:$0xf]
        %v327 = vld [vmem:[%s3 + $0x24] sm:$0xf]
        %v328 = vld [vmem:[%s3 + $0x28] sm:$0xf]
        %v329 = vld [vmem:[%s3 + $0x2c] sm:$0xf]
        %v330 = vld [vmem:[%s3 + $0x30] sm:$0xf]
        %v331 = vld [vmem:[%s3 + $0x34] sm:$0xf]
        %v332 = vld [vmem:[%s3 + $0x38] sm:$0xf]
        %v333 = vld [vmem:[%s3 + $0x3c] sm:$0xf]
        %v334 = vld [vmem:[%s4] sm:$0x1]
        %v336 = vlaneseq
        %v337 = vshrl.u32 %v336, 7
        %v338 = vsub.s32 0, %v337
        %v339 = vrot.slane %v334, %v338
        %v357 = vunpack.c.l.b16 %v318
        %v358 = vunpack.c.l.b16 %v319
        %v359 = vunpack.c.l.b16 %v320
        %v360 = vunpack.c.l.b16 %v321
        %v361 = vunpack.c.l.b16 %v322
        %v362 = vunpack.c.l.b16 %v323
        %v363 = vunpack.c.l.b16 %v324
        %v364 = vunpack.c.l.b16 %v325
        %v365 = vunpack.c.l.b16 %v326
        %v366 = vunpack.c.l.b16 %v327
        %v367 = vunpack.c.l.b16 %v328
        %v368 = vunpack.c.l.b16 %v329
        %v369 = vunpack.c.l.b16 %v330
        %v370 = vunpack.c.l.b16 %v331
        %v371 = vunpack.c.l.b16 %v332
        %v372 = vunpack.c.l.b16 %v333
        %v373 = vpack.c.b16 %v358, %v357
        %v374 = vpack.c.b16 %v360, %v359
        %v375 = vpack.c.b16 %v362, %v361
        %v376 = vpack.c.b16 %v364, %v363
        %v377 = vpack.c.b16 %v366, %v365
        %v378 = vpack.c.b16 %v368, %v367
        %v379 = vpack.c.b16 %v370, %v369
        %v380 = vpack.c.b16 %v372, %v371
        %389 = vmatprep.subr.bf16.mxu0 0
        %390 = vmatpush1.bf16.msra.mxu0 %v373
        %391 = vmatprep.subr.bf16.mxu0 0
        %392 = vmatpush1.bf16.msra.mxu0 %v374
        %393 = vmatprep.subr.bf16.mxu0 0
        %394 = vmatpush1.bf16.msra.mxu0 %v375
        %395 = vmatprep.subr.bf16.mxu0 0
        %396 = vmatpush1.bf16.msra.mxu0 %v376
        %397 = vmatprep.subr.bf16.mxu0 0
        %398 = vmatpush1.bf16.msra.mxu0 %v377
        %399 = vmatprep.subr.bf16.mxu0 0
        %400 = vmatpush1.bf16.msra.mxu0 %v378
        %401 = vmatprep.subr.bf16.mxu0 0
        %402 = vmatpush1.bf16.msra.mxu0 %v379
        %403 = vmatprep.subr.bf16.mxu0 0
        %404 = vmatpush1.bf16.msra.mxu0 %v380
        %405 = vmatprep.subr.bf16.mxu0 0
        %406 = vmatpush1.bf16.msra.mxu0 0
        %407 = vmatprep.subr.bf16.mxu0 0
        %408 = vmatpush1.bf16.msra.mxu0 0
        %409 = vmatprep.subr.bf16.mxu0 0
        %410 = vmatpush1.bf16.msra.mxu0 0
        %411 = vmatprep.subr.bf16.mxu0 0
        %412 = vmatpush1.bf16.msra.mxu0 0
        %413 = vmatprep.subr.bf16.mxu0 0
        %414 = vmatpush1.bf16.msra.mxu0 0
        %415 = vmatprep.subr.bf16.mxu0 0
        %416 = vmatpush1.bf16.msra.mxu0 0
        %417 = vmatprep.subr.bf16.mxu0 0
        %418 = vmatpush1.bf16.msra.mxu0 0
        %419 = vmatprep.subr.bf16.mxu0 0
        %420 = vmatpush1.bf16.msra.mxu0 0
        %421 = vmatprep.mubr.bf16.mxu0 0
        %422 = vmatmul.mubr.bf16.gmra.mrb[0].mxu0 %v316
        %v423 = vpop.f32.mrb[0].mxu0
        %v424 = vadd.f32 %v339, %v423
        %v425 = vpop.f32.mrb[0].mxu0
        %v426 = vpop.f32.mrb[0].mxu0
        %v427 = vadd.f32 %v339, %v426
        %v428 = vpop.f32.mrb[0].mxu0
        %429 = vmatprep.mubr.bf16.mxu0 0
        %430 = vmatmul.mubr.bf16.gmra.mrb[0].mxu0 %v317
        %v431 = vpop.f32.mrb[0].mxu0
        %v432 = vadd.f32 %v339, %v431
        %v433 = vpop.f32.mrb[0].mxu0
        %v434 = vpop.f32.mrb[0].mxu0
        %v435 = vadd.f32 %v339, %v434
        %v436 = vpop.f32.mrb[0].mxu0
        %437 = vdwg.mxu0
        %v438 = vtanh.pop %v424
        %v439 = vtanh.pop %v427
        %v440 = vtanh.pop %v432
        %v441 = vtanh.pop %v435
        %442 = vst [vmem:[%s218] sm:$0xff] %v438
        %443 = vst [vmem:[%s218 + $0x8] sm:$0xff] %v439
        %444 = vst [vmem:[%s218 + $0x10] sm:$0xff] %v440
        %445 = vst [vmem:[%s218 + $0x18] sm:$0xff] %v441
        %s446 = sand.u32 %s137, 1
        %s447 = scalar_lea.sflag [#allocation3], %s446
        %s448 = sand.u32 %s137, 1
        %s449 = smul.addr %s448, 32
        %s450 = scalar_lea.vmem [#allocation2], %s449
        // Predicated region
        $region41: #{tpu_custom_call.1} parent=39 // pred_check
          %p451 = pneg %p147
        $region42: #{tpu_custom_call.1} parent=39 // pred_check_branch
          %453 = sbr.rel (%p451) target = $region44
        $region43: #{tpu_custom_call.1} parent=39 // pred_region
          %s454 = smul.u32 4, %s19
          %s456 = ssub.s32 512, 512
          %457 = vsyncadd %s447, %s456
          %s458 = smul.addr %s454, 128
          %s459 = scalar_lea.hbm %s5, %s458
          %s460 = sshll.u32 %s450, 4
          %s461 = int_to_ptr.vmem [resolvable:$true] %s460
          %466 = dma.vmem_to_hbm [thread:$0]  %s461, 512, %s459, %s447, 128, 128, 8
        $region44: #{tpu_custom_call.1} parent=39 // pred_fallthru
          _
      $region40: #{tpu_custom_call.1} parent=5 // pred_fallthru
        _
      %p467 = scmp.le.s32.totalorder 2, %s14
      // Predicated region
      $region45: #{tpu_custom_call.1} parent=5 // pred_check
        %p468 = pneg %p467
      $region46: #{tpu_custom_call.1} parent=5 // pred_check_branch
        %470 = sbr.rel (%p468) target = $region48
      $region47: #{tpu_custom_call.1} parent=5 // pred_region
        %s471 = ssub.s32 %s14, 2
        // Predicated region
        $region49: #{tpu_custom_call.1} parent=47 // pred_check
          %p472 = pneg %p153
        $region50: #{tpu_custom_call.1} parent=47 // pred_check_branch
          %474 = sbr.rel (%p472) target = $region52
        $region51: #{tpu_custom_call.1} parent=47 // pred_region
          %s475 = sand.u32 %s138, 1
          %s476 = scalar_lea.sflag [#allocation3], %s475
          %s477 = sand.u32 %s138, 1
          %s478 = smul.addr %s477, 32
          %s479 = scalar_lea.vmem [#allocation2], %s478
          %480 = dma.done %s476, 512
        $region52: #{tpu_custom_call.1} parent=47 // pred_fallthru
          _
      $region48: #{tpu_custom_call.1} parent=5 // pred_fallthru
        _
    $region6: #{tpu_custom_call.1} parent=1 // loop_footer
      %s18 = sadd.s32 1, %s14
    $region7: #{tpu_custom_call.1} parent=1 // loop_footer_branch
      %13 = sbr.rel target = $region3
    $region8: #{tpu_custom_call.1} parent=1 // loop_exit
      _
    %481 = vsyncpa [#allocation3], 1
    %s482 = scalar_lea.sflag [#allocation3], 1
    %483 = vsyncpa %s482, 1

</llo_original>
